<compile_context>
chip_gen: v7x
topology: tpu7x:2x2x1
jax: 0.10.0
libtpu: 0.0.40
codegen_flags: <defaults>
</compile_context>

<pallas_src>
import functools

import jax
import jax.numpy as jnp
from jax import lax
from jax.experimental import pallas as pl
from jax.experimental.pallas import tpu as pltpu


# ----------------------------- Pallas kernel ---------------------------------
def _predictor_kernel(x_ref, wfc_ref, wconv_ref, bconv_ref, bfc_ref, out_ref, *,
                      C, HW, W, kh, kw, stride, dilation, q_valid):
    # x_ref    : [BB, C*H*W]   f32  (VMEM)  flat (channel-major) input rows
    # wfc_ref  : [2, Qv]       bf16 (VMEM)  FC weight scattered onto the dense
    #                                       flat conv grid (zeros elsewhere)
    # wconv_ref: [C*kh*kw]     f32  (SMEM)  conv weights as scalars
    # bconv_ref: [1]           f32  (SMEM)
    # bfc_ref  : [2]           f32  (SMEM)
    # out_ref  : [2, BB]       f32  (VMEM)  lane-dense (batch on lanes)
    bb = x_ref.shape[0]

    # ---- Conv2d(C -> 1) as C*kh*kw shifted-slice FMAs on the VPU -------------
    # acc[b, q] = sum_{c,i,j} w[c,i,j] * x[b, c*H*W + q + i*dil*W + j*dil]
    # (dense, stride-1 flat grid; strided / ragged positions are filtered out
    #  later by the zero-padded FC weight).
    acc = jnp.zeros((bb, q_valid), dtype=jnp.float32)
    k = 0
    for c in range(C):
        base = c * HW
        for i in range(kh):
            for j in range(kw):
                dk = base + i * dilation * W + j * dilation
                sl = x_ref[:, pl.ds(dk, q_valid)]            # [BB, Qv]
                acc = acc + wconv_ref[k] * sl.astype(jnp.float32)
                k += 1
    conv = jnp.maximum(acc + bconv_ref[0], 0.0)              # bias + ReLU (f32)

    # ---- flatten + Linear(P -> 2) as one MXU dot ------------------------------
    # wfc is zero at flat positions that are not real conv outputs, so the
    # extra dense positions (incl. garbage ragged row ends) contribute nothing.
    fc = lax.dot_general(wfc_ref[...], conv.astype(jnp.bfloat16),
                         dimension_numbers=(((1,), (1,)), ((), ())),
                         preferred_element_type=jnp.float32)  # [2, BB]

    # FC bias from SMEM scalars (out_features == 2, matching the module).
    row = lax.broadcasted_iota(jnp.int32, fc.shape, 0)
    bias = jnp.where(row == 0, bfc_ref[0], bfc_ref[1])
    out_ref[...] = fc + bias                                  # one dense store


# ------------------------------ JAX glue --------------------------------------
def _out_hw(H, W, kh, kw, stride, dilation):
    H_out = (H - dilation * (kh - 1) - 1) // stride + 1
    W_out = (W - dilation * (kw - 1) - 1) // stride + 1
    return H_out, W_out


@functools.partial(jax.jit,
                   static_argnames=("kh", "kw", "stride", "dilation", "block_b"))
def predictor_forward(x, w_conv, b_conv, w_fc, b_fc, *,
                      kh, kw, stride, dilation, block_b=128):
    """
    x      : [B, C, H, W] float32
    w_conv : [1, C, kh, kw]  (PyTorch Conv2d weight layout, OIHW)
    b_conv : [1]
    w_fc   : [2, P]          (PyTorch Linear weight layout), P = H_out*W_out
    b_fc   : [2]
    returns: [B, 2] float32
    """
    B, C, H, W = x.shape
    H_out, W_out = _out_hw(H, W, kh, kw, stride, dilation)
    P = H_out * W_out
    K = C * kh * kw
    HW = H * W
    # Width of the dense flat-grid accumulation; covers the last strided output
    # position and keeps every in-kernel slice inside [0, C*H*W).
    Qv = (H_out - 1) * stride * W + (W_out - 1) * stride + 1

    x2 = x.astype(jnp.float32).reshape(B, C * HW)            # free reshape, no copy

    # Batch block: whole batch for small B; otherwise a 128-multiple so the
    # [2, BB] output stores are full-lane and the DMA blocks are big enough to
    # amortize per-step pipeline overhead.  B > BB gives >=2 grid steps, which
    # the "parallel" axis can shard across v7x's two TensorCores.
    if B <= block_b:
        BB = B
    else:
        BB = max(128, (block_b // 128) * 128)
        # Keep the double-buffered x block within a conservative VMEM budget
        # (sized against v7x's 64 MiB physical VMEM).
        while BB > 128 and 2 * BB * C * HW * 4 > 24 * (1 << 20):
            BB -= 128
        if BB >= B:
            BB = B
    # TODO(synk): for very large C*H*W a single 128-row block may not fit VMEM;
    # that case needs an additional channel/spatial tiling of the block.
    n_steps = pl.cdiv(B, BB)
    B_pad = n_steps * BB
    if B_pad != B:
        x2 = jnp.pad(x2, ((0, B_pad - B), (0, 0)))

    # Scatter the FC weight onto the dense flat grid (bf16, lane-dense [2, Qv]).
    ho = jnp.arange(H_out)
    wo = jnp.arange(W_out)
    q_idx = (ho[:, None] * (stride * W) + wo[None, :] * stride).reshape(-1)  # [P]
    wfc_flat = jnp.zeros((2, Qv), jnp.bfloat16).at[:, q_idx].set(
        w_fc.astype(jnp.bfloat16))

    wconv_flat = w_conv.reshape(K).astype(jnp.float32)       # (c, kh, kw) order
    bconv = b_conv.reshape(1).astype(jnp.float32)
    bfc = b_fc.reshape(2).astype(jnp.float32)

    kernel = functools.partial(_predictor_kernel, C=C, HW=HW, W=W, kh=kh, kw=kw,
                               stride=stride, dilation=dilation, q_valid=Qv)

    x_block_bytes = BB * C * HW * 4
    vmem_limit = int(min(100 * (1 << 20),
                         max(16 * (1 << 20),
                             2 * x_block_bytes + 3 * BB * Qv * 4 + 2 * (1 << 20))))

    out = pl.pallas_call(
        kernel,
        out_shape=jax.ShapeDtypeStruct((2, B_pad), jnp.float32),
        grid_spec=pltpu.PrefetchScalarGridSpec(
            num_scalar_prefetch=0,
            grid=(n_steps,),
            in_specs=[
                pl.BlockSpec((BB, C * HW), lambda b: (b, 0)),               # x
                pl.BlockSpec((2, Qv), lambda b: (0, 0)),                    # fc w
                pl.BlockSpec(memory_space=pltpu.MemorySpace.SMEM),          # conv w
                pl.BlockSpec(memory_space=pltpu.MemorySpace.SMEM),          # conv b
                pl.BlockSpec(memory_space=pltpu.MemorySpace.SMEM),          # fc b
            ],
            out_specs=pl.BlockSpec((2, BB), lambda b: (0, b)),
        ),
        compiler_params=pltpu.CompilerParams(
            dimension_semantics=("parallel",),
            vmem_limit_bytes=vmem_limit),
    )(x2, wfc_flat, wconv_flat, bconv, bfc)

    return out[:, :B].T                                      # [B, 2]


def predictor_network_forward(params, x, metadata, *, kh, kw, stride, dilation):
    """Mirrors PredictorNetwork.forward's return structure."""
    y = predictor_forward(x, params["w_conv"], params["b_conv"],
                          params["w_fc"], params["b_fc"],
                          kh=kh, kw=kw, stride=stride, dilation=dilation)
    return ((y, metadata), (None, None), (None, None))


# --------------------------- pure-JAX reference -------------------------------
def _reference_forward(x, w_conv, b_conv, w_fc, b_fc, stride, dilation):
    conv = lax.conv_general_dilated(
        x, w_conv, window_strides=(stride, stride), padding="VALID",
        rhs_dilation=(dilation, dilation),
        dimension_numbers=("NCHW", "OIHW", "NCHW"))
    conv = jax.nn.relu(conv + b_conv.reshape(1, -1, 1, 1))
    flat = conv.reshape(conv.shape[0], -1)
    return flat @ w_fc.T + b_fc


# ----------------------------------- main --------------------------------------
if __name__ == "__main__":
    B, C, H, W = 2, 4, 16, 16

    def run_case(seed, kh, kw, stride, dilation):
        H_out, W_out = _out_hw(H, W, kh, kw, stride, dilation)
        P = H_out * W_out
        key = jax.random.PRNGKey(seed)
        k_x, k_wc, k_bc, k_wf, k_bf = jax.random.split(key, 5)
        x = jax.random.normal(k_x, (B, C, H, W), dtype=jnp.float32)
        params = {
            "w_conv": 0.1 * jax.random.normal(k_wc, (1, C, kh, kw), jnp.float32),
            "b_conv": 0.1 * jax.random.normal(k_bc, (1,), jnp.float32),
            "w_fc":   0.1 * jax.random.normal(k_wf, (2, P), jnp.float32),
            "b_fc":   0.1 * jax.random.normal(k_bf, (2,), jnp.float32),
        }
        metadata = {"id": seed}
        ((y, _md), _, _) = predictor_network_forward(
            params, x, metadata, kh=kh, kw=kw, stride=stride, dilation=dilation)
        y = jax.block_until_ready(y)
        y_ref = _reference_forward(x, params["w_conv"], params["b_conv"],
                                   params["w_fc"], params["b_fc"],
                                   stride, dilation)
        assert y.shape == (B, 2)
        # Conv math is f32; only the FC operands are bf16 (f32 accumulation),
        # so the error vs the f32 reference is O(1e-3).
        assert jnp.allclose(y, y_ref, atol=1e-2, rtol=1e-2), \
            f"mismatch vs reference (kh={kh},kw={kw},s={stride},d={dilation})"

    # Config consistent with the module's defaults, plus a strided/dilated case
    # to exercise the dense-grid / scattered-FC-weight path.
    run_case(0, kh=3, kw=3, stride=1, dilation=1)   # flatten_size = 14*14 = 196
    run_case(0, kh=3, kw=3, stride=2, dilation=2)   # flatten_size = 6*6   = 36

    print("KERNEL_OK")
</pallas_src>

<mosaic_0001>
module attributes {stable_mosaic.version = 11 : i64} {
  func.func @_predictor_kernel(%arg0: i32, %arg1: memref<2x1024xf32, #tpu.memory_space<vmem>>, %arg2: memref<2x222xbf16, #tpu.memory_space<vmem>>, %arg3: memref<36xf32, #tpu.memory_space<smem>>, %arg4: memref<1xf32, #tpu.memory_space<smem>>, %arg5: memref<2xf32, #tpu.memory_space<smem>>, %arg6: memref<2x2xf32, #tpu.memory_space<vmem>>) attributes {dimension_semantics = [#tpu.dimension_semantics<parallel>], iteration_bounds = array<i64: 1>, scalar_prefetch = 0 : i64, scratch_operands = 0 : i64, tpu.core_type = #tpu.core_type<tc>, window_params = [{transform_indices = @transform_0, window_bounds = array<i64: 2, 1024>}, {pipeline_mode = #tpu.pipeline_mode<synchronous>, transform_indices = @transform_1, window_bounds = array<i64: 2, 222>}, {transform_indices = @transform_2, window_bounds = array<i64: 36>}, {transform_indices = @transform_3, window_bounds = array<i64: 1>}, {transform_indices = @transform_4, window_bounds = array<i64: 2>}, {transform_indices = @transform_5, window_bounds = array<i64: 2, 2>}]} {
    %cst = arith.constant 0.000000e+00 : f32
    %0 = vector.broadcast %cst : f32 to vector<2x222xf32>
    %c0 = arith.constant 0 : index
    %c0_0 = arith.constant 0 : index
    %1 = vector.load %arg1[%c0, %c0_0] : memref<2x1024xf32, #tpu.memory_space<vmem>>, vector<2x222xf32>
    %c0_1 = arith.constant 0 : index
    %2 = memref.load %arg3[%c0_1] : memref<36xf32, #tpu.memory_space<smem>>
    %3 = vector.broadcast %2 : f32 to vector<2x222xf32>
    %4 = arith.mulf %3, %1 : vector<2x222xf32>
    %5 = arith.addf %0, %4 : vector<2x222xf32>
    %c0_2 = arith.constant 0 : index
    %c1 = arith.constant 1 : index
    %6 = vector.load %arg1[%c0_2, %c1] : memref<2x1024xf32, #tpu.memory_space<vmem>>, vector<2x222xf32>
    %c1_3 = arith.constant 1 : index
    %7 = memref.load %arg3[%c1_3] : memref<36xf32, #tpu.memory_space<smem>>
    %8 = vector.broadcast %7 : f32 to vector<2x222xf32>
    %9 = arith.mulf %8, %6 : vector<2x222xf32>
    %10 = arith.addf %5, %9 : vector<2x222xf32>
    %c0_4 = arith.constant 0 : index
    %c2 = arith.constant 2 : index
    %11 = vector.load %arg1[%c0_4, %c2] : memref<2x1024xf32, #tpu.memory_space<vmem>>, vector<2x222xf32>
    %c2_5 = arith.constant 2 : index
    %12 = memref.load %arg3[%c2_5] : memref<36xf32, #tpu.memory_space<smem>>
    %13 = vector.broadcast %12 : f32 to vector<2x222xf32>
    %14 = arith.mulf %13, %11 : vector<2x222xf32>
    %15 = arith.addf %10, %14 : vector<2x222xf32>
    %c0_6 = arith.constant 0 : index
    %c16 = arith.constant 16 : index
    %16 = vector.load %arg1[%c0_6, %c16] : memref<2x1024xf32, #tpu.memory_space<vmem>>, vector<2x222xf32>
    %c3 = arith.constant 3 : index
    %17 = memref.load %arg3[%c3] : memref<36xf32, #tpu.memory_space<smem>>
    %18 = vector.broadcast %17 : f32 to vector<2x222xf32>
    %19 = arith.mulf %18, %16 : vector<2x222xf32>
    %20 = arith.addf %15, %19 : vector<2x222xf32>
    %c0_7 = arith.constant 0 : index
    %c17 = arith.constant 17 : index
    %21 = vector.load %arg1[%c0_7, %c17] : memref<2x1024xf32, #tpu.memory_space<vmem>>, vector<2x222xf32>
    %c4 = arith.constant 4 : index
    %22 = memref.load %arg3[%c4] : memref<36xf32, #tpu.memory_space<smem>>
    %23 = vector.broadcast %22 : f32 to vector<2x222xf32>
    %24 = arith.mulf %23, %21 : vector<2x222xf32>
    %25 = arith.addf %20, %24 : vector<2x222xf32>
    %c0_8 = arith.constant 0 : index
    %c18 = arith.constant 18 : index
    %26 = vector.load %arg1[%c0_8, %c18] : memref<2x1024xf32, #tpu.memory_space<vmem>>, vector<2x222xf32>
    %c5 = arith.constant 5 : index
    %27 = memref.load %arg3[%c5] : memref<36xf32, #tpu.memory_space<smem>>
    %28 = vector.broadcast %27 : f32 to vector<2x222xf32>
    %29 = arith.mulf %28, %26 : vector<2x222xf32>
    %30 = arith.addf %25, %29 : vector<2x222xf32>
    %c0_9 = arith.constant 0 : index
    %c32 = arith.constant 32 : index
    %31 = vector.load %arg1[%c0_9, %c32] : memref<2x1024xf32, #tpu.memory_space<vmem>>, vector<2x222xf32>
    %c6 = arith.constant 6 : index
    %32 = memref.load %arg3[%c6] : memref<36xf32, #tpu.memory_space<smem>>
    %33 = vector.broadcast %32 : f32 to vector<2x222xf32>
    %34 = arith.mulf %33, %31 : vector<2x222xf32>
    %35 = arith.addf %30, %34 : vector<2x222xf32>
    %c0_10 = arith.constant 0 : index
    %c33 = arith.constant 33 : index
    %36 = vector.load %arg1[%c0_10, %c33] : memref<2x1024xf32, #tpu.memory_space<vmem>>, vector<2x222xf32>
    %c7 = arith.constant 7 : index
    %37 = memref.load %arg3[%c7] : memref<36xf32, #tpu.memory_space<smem>>
    %38 = vector.broadcast %37 : f32 to vector<2x222xf32>
    %39 = arith.mulf %38, %36 : vector<2x222xf32>
    %40 = arith.addf %35, %39 : vector<2x222xf32>
    %c0_11 = arith.constant 0 : index
    %c34 = arith.constant 34 : index
    %41 = vector.load %arg1[%c0_11, %c34] : memref<2x1024xf32, #tpu.memory_space<vmem>>, vector<2x222xf32>
    %c8 = arith.constant 8 : index
    %42 = memref.load %arg3[%c8] : memref<36xf32, #tpu.memory_space<smem>>
    %43 = vector.broadcast %42 : f32 to vector<2x222xf32>
    %44 = arith.mulf %43, %41 : vector<2x222xf32>
    %45 = arith.addf %40, %44 : vector<2x222xf32>
    %c0_12 = arith.constant 0 : index
    %c256 = arith.constant 256 : index
    %46 = vector.load %arg1[%c0_12, %c256] : memref<2x1024xf32, #tpu.memory_space<vmem>>, vector<2x222xf32>
    %c9 = arith.constant 9 : index
    %47 = memref.load %arg3[%c9] : memref<36xf32, #tpu.memory_space<smem>>
    %48 = vector.broadcast %47 : f32 to vector<2x222xf32>
    %49 = arith.mulf %48, %46 : vector<2x222xf32>
    %50 = arith.addf %45, %49 : vector<2x222xf32>
    %c0_13 = arith.constant 0 : index
    %c257 = arith.constant 257 : index
    %51 = vector.load %arg1[%c0_13, %c257] : memref<2x1024xf32, #tpu.memory_space<vmem>>, vector<2x222xf32>
    %c10 = arith.constant 10 : index
    %52 = memref.load %arg3[%c10] : memref<36xf32, #tpu.memory_space<smem>>
    %53 = vector.broadcast %52 : f32 to vector<2x222xf32>
    %54 = arith.mulf %53, %51 : vector<2x222xf32>
    %55 = arith.addf %50, %54 : vector<2x222xf32>
    %c0_14 = arith.constant 0 : index
    %c258 = arith.constant 258 : index
    %56 = vector.load %arg1[%c0_14, %c258] : memref<2x1024xf32, #tpu.memory_space<vmem>>, vector<2x222xf32>
    %c11 = arith.constant 11 : index
    %57 = memref.load %arg3[%c11] : memref<36xf32, #tpu.memory_space<smem>>
    %58 = vector.broadcast %57 : f32 to vector<2x222xf32>
    %59 = arith.mulf %58, %56 : vector<2x222xf32>
    %60 = arith.addf %55, %59 : vector<2x222xf32>
    %c0_15 = arith.constant 0 : index
    %c272 = arith.constant 272 : index
    %61 = vector.load %arg1[%c0_15, %c272] : memref<2x1024xf32, #tpu.memory_space<vmem>>, vector<2x222xf32>
    %c12 = arith.constant 12 : index
    %62 = memref.load %arg3[%c12] : memref<36xf32, #tpu.memory_space<smem>>
    %63 = vector.broadcast %62 : f32 to vector<2x222xf32>
    %64 = arith.mulf %63, %61 : vector<2x222xf32>
    %65 = arith.addf %60, %64 : vector<2x222xf32>
    %c0_16 = arith.constant 0 : index
    %c273 = arith.constant 273 : index
    %66 = vector.load %arg1[%c0_16, %c273] : memref<2x1024xf32, #tpu.memory_space<vmem>>, vector<2x222xf32>
    %c13 = arith.constant 13 : index
    %67 = memref.load %arg3[%c13] : memref<36xf32, #tpu.memory_space<smem>>
    %68 = vector.broadcast %67 : f32 to vector<2x222xf32>
    %69 = arith.mulf %68, %66 : vector<2x222xf32>
    %70 = arith.addf %65, %69 : vector<2x222xf32>
    %c0_17 = arith.constant 0 : index
    %c274 = arith.constant 274 : index
    %71 = vector.load %arg1[%c0_17, %c274] : memref<2x1024xf32, #tpu.memory_space<vmem>>, vector<2x222xf32>
    %c14 = arith.constant 14 : index
    %72 = memref.load %arg3[%c14] : memref<36xf32, #tpu.memory_space<smem>>
    %73 = vector.broadcast %72 : f32 to vector<2x222xf32>
    %74 = arith.mulf %73, %71 : vector<2x222xf32>
    %75 = arith.addf %70, %74 : vector<2x222xf32>
    %c0_18 = arith.constant 0 : index
    %c288 = arith.constant 288 : index
    %76 = vector.load %arg1[%c0_18, %c288] : memref<2x1024xf32, #tpu.memory_space<vmem>>, vector<2x222xf32>
    %c15 = arith.constant 15 : index
    %77 = memref.load %arg3[%c15] : memref<36xf32, #tpu.memory_space<smem>>
    %78 = vector.broadcast %77 : f32 to vector<2x222xf32>
    %79 = arith.mulf %78, %76 : vector<2x222xf32>
    %80 = arith.addf %75, %79 : vector<2x222xf32>
    %c0_19 = arith.constant 0 : index
    %c289 = arith.constant 289 : index
    %81 = vector.load %arg1[%c0_19, %c289] : memref<2x1024xf32, #tpu.memory_space<vmem>>, vector<2x222xf32>
    %c16_20 = arith.constant 16 : index
    %82 = memref.load %arg3[%c16_20] : memref<36xf32, #tpu.memory_space<smem>>
    %83 = vector.broadcast %82 : f32 to vector<2x222xf32>
    %84 = arith.mulf %83, %81 : vector<2x222xf32>
    %85 = arith.addf %80, %84 : vector<2x222xf32>
    %c0_21 = arith.constant 0 : index
    %c290 = arith.constant 290 : index
    %86 = vector.load %arg1[%c0_21, %c290] : memref<2x1024xf32, #tpu.memory_space<vmem>>, vector<2x222xf32>
    %c17_22 = arith.constant 17 : index
    %87 = memref.load %arg3[%c17_22] : memref<36xf32, #tpu.memory_space<smem>>
    %88 = vector.broadcast %87 : f32 to vector<2x222xf32>
    %89 = arith.mulf %88, %86 : vector<2x222xf32>
    %90 = arith.addf %85, %89 : vector<2x222xf32>
    %c0_23 = arith.constant 0 : index
    %c512 = arith.constant 512 : index
    %91 = vector.load %arg1[%c0_23, %c512] : memref<2x1024xf32, #tpu.memory_space<vmem>>, vector<2x222xf32>
    %c18_24 = arith.constant 18 : index
    %92 = memref.load %arg3[%c18_24] : memref<36xf32, #tpu.memory_space<smem>>
    %93 = vector.broadcast %92 : f32 to vector<2x222xf32>
    %94 = arith.mulf %93, %91 : vector<2x222xf32>
    %95 = arith.addf %90, %94 : vector<2x222xf32>
    %c0_25 = arith.constant 0 : index
    %c513 = arith.constant 513 : index
    %96 = vector.load %arg1[%c0_25, %c513] : memref<2x1024xf32, #tpu.memory_space<vmem>>, vector<2x222xf32>
    %c19 = arith.constant 19 : index
    %97 = memref.load %arg3[%c19] : memref<36xf32, #tpu.memory_space<smem>>
    %98 = vector.broadcast %97 : f32 to vector<2x222xf32>
    %99 = arith.mulf %98, %96 : vector<2x222xf32>
    %100 = arith.addf %95, %99 : vector<2x222xf32>
    %c0_26 = arith.constant 0 : index
    %c514 = arith.constant 514 : index
    %101 = vector.load %arg1[%c0_26, %c514] : memref<2x1024xf32, #tpu.memory_space<vmem>>, vector<2x222xf32>
    %c20 = arith.constant 20 : index
    %102 = memref.load %arg3[%c20] : memref<36xf32, #tpu.memory_space<smem>>
    %103 = vector.broadcast %102 : f32 to vector<2x222xf32>
    %104 = arith.mulf %103, %101 : vector<2x222xf32>
    %105 = arith.addf %100, %104 : vector<2x222xf32>
    %c0_27 = arith.constant 0 : index
    %c528 = arith.constant 528 : index
    %106 = vector.load %arg1[%c0_27, %c528] : memref<2x1024xf32, #tpu.memory_space<vmem>>, vector<2x222xf32>
    %c21 = arith.constant 21 : index
    %107 = memref.load %arg3[%c21] : memref<36xf32, #tpu.memory_space<smem>>
    %108 = vector.broadcast %107 : f32 to vector<2x222xf32>
    %109 = arith.mulf %108, %106 : vector<2x222xf32>
    %110 = arith.addf %105, %109 : vector<2x222xf32>
    %c0_28 = arith.constant 0 : index
    %c529 = arith.constant 529 : index
    %111 = vector.load %arg1[%c0_28, %c529] : memref<2x1024xf32, #tpu.memory_space<vmem>>, vector<2x222xf32>
    %c22 = arith.constant 22 : index
    %112 = memref.load %arg3[%c22] : memref<36xf32, #tpu.memory_space<smem>>
    %113 = vector.broadcast %112 : f32 to vector<2x222xf32>
    %114 = arith.mulf %113, %111 : vector<2x222xf32>
    %115 = arith.addf %110, %114 : vector<2x222xf32>
    %c0_29 = arith.constant 0 : index
    %c530 = arith.constant 530 : index
    %116 = vector.load %arg1[%c0_29, %c530] : memref<2x1024xf32, #tpu.memory_space<vmem>>, vector<2x222xf32>
    %c23 = arith.constant 23 : index
    %117 = memref.load %arg3[%c23] : memref<36xf32, #tpu.memory_space<smem>>
    %118 = vector.broadcast %117 : f32 to vector<2x222xf32>
    %119 = arith.mulf %118, %116 : vector<2x222xf32>
    %120 = arith.addf %115, %119 : vector<2x222xf32>
    %c0_30 = arith.constant 0 : index
    %c544 = arith.constant 544 : index
    %121 = vector.load %arg1[%c0_30, %c544] : memref<2x1024xf32, #tpu.memory_space<vmem>>, vector<2x222xf32>
    %c24 = arith.constant 24 : index
    %122 = memref.load %arg3[%c24] : memref<36xf32, #tpu.memory_space<smem>>
    %123 = vector.broadcast %122 : f32 to vector<2x222xf32>
    %124 = arith.mulf %123, %121 : vector<2x222xf32>
    %125 = arith.addf %120, %124 : vector<2x222xf32>
    %c0_31 = arith.constant 0 : index
    %c545 = arith.constant 545 : index
    %126 = vector.load %arg1[%c0_31, %c545] : memref<2x1024xf32, #tpu.memory_space<vmem>>, vector<2x222xf32>
    %c25 = arith.constant 25 : index
    %127 = memref.load %arg3[%c25] : memref<36xf32, #tpu.memory_space<smem>>
    %128 = vector.broadcast %127 : f32 to vector<2x222xf32>
    %129 = arith.mulf %128, %126 : vector<2x222xf32>
    %130 = arith.addf %125, %129 : vector<2x222xf32>
    %c0_32 = arith.constant 0 : index
    %c546 = arith.constant 546 : index
    %131 = vector.load %arg1[%c0_32, %c546] : memref<2x1024xf32, #tpu.memory_space<vmem>>, vector<2x222xf32>
    %c26 = arith.constant 26 : index
    %132 = memref.load %arg3[%c26] : memref<36xf32, #tpu.memory_space<smem>>
    %133 = vector.broadcast %132 : f32 to vector<2x222xf32>
    %134 = arith.mulf %133, %131 : vector<2x222xf32>
    %135 = arith.addf %130, %134 : vector<2x222xf32>
    %c0_33 = arith.constant 0 : index
    %c768 = arith.constant 768 : index
    %136 = vector.load %arg1[%c0_33, %c768] : memref<2x1024xf32, #tpu.memory_space<vmem>>, vector<2x222xf32>
    %c27 = arith.constant 27 : index
    %137 = memref.load %arg3[%c27] : memref<36xf32, #tpu.memory_space<smem>>
    %138 = vector.broadcast %137 : f32 to vector<2x222xf32>
    %139 = arith.mulf %138, %136 : vector<2x222xf32>
    %140 = arith.addf %135, %139 : vector<2x222xf32>
    %c0_34 = arith.constant 0 : index
    %c769 = arith.constant 769 : index
    %141 = vector.load %arg1[%c0_34, %c769] : memref<2x1024xf32, #tpu.memory_space<vmem>>, vector<2x222xf32>
    %c28 = arith.constant 28 : index
    %142 = memref.load %arg3[%c28] : memref<36xf32, #tpu.memory_space<smem>>
    %143 = vector.broadcast %142 : f32 to vector<2x222xf32>
    %144 = arith.mulf %143, %141 : vector<2x222xf32>
    %145 = arith.addf %140, %144 : vector<2x222xf32>
    %c0_35 = arith.constant 0 : index
    %c770 = arith.constant 770 : index
    %146 = vector.load %arg1[%c0_35, %c770] : memref<2x1024xf32, #tpu.memory_space<vmem>>, vector<2x222xf32>
    %c29 = arith.constant 29 : index
    %147 = memref.load %arg3[%c29] : memref<36xf32, #tpu.memory_space<smem>>
    %148 = vector.broadcast %147 : f32 to vector<2x222xf32>
    %149 = arith.mulf %148, %146 : vector<2x222xf32>
    %150 = arith.addf %145, %149 : vector<2x222xf32>
    %c0_36 = arith.constant 0 : index
    %c784 = arith.constant 784 : index
    %151 = vector.load %arg1[%c0_36, %c784] : memref<2x1024xf32, #tpu.memory_space<vmem>>, vector<2x222xf32>
    %c30 = arith.constant 30 : index
    %152 = memref.load %arg3[%c30] : memref<36xf32, #tpu.memory_space<smem>>
    %153 = vector.broadcast %152 : f32 to vector<2x222xf32>
    %154 = arith.mulf %153, %151 : vector<2x222xf32>
    %155 = arith.addf %150, %154 : vector<2x222xf32>
    %c0_37 = arith.constant 0 : index
    %c785 = arith.constant 785 : index
    %156 = vector.load %arg1[%c0_37, %c785] : memref<2x1024xf32, #tpu.memory_space<vmem>>, vector<2x222xf32>
    %c31 = arith.constant 31 : index
    %157 = memref.load %arg3[%c31] : memref<36xf32, #tpu.memory_space<smem>>
    %158 = vector.broadcast %157 : f32 to vector<2x222xf32>
    %159 = arith.mulf %158, %156 : vector<2x222xf32>
    %160 = arith.addf %155, %159 : vector<2x222xf32>
    %c0_38 = arith.constant 0 : index
    %c786 = arith.constant 786 : index
    %161 = vector.load %arg1[%c0_38, %c786] : memref<2x1024xf32, #tpu.memory_space<vmem>>, vector<2x222xf32>
    %c32_39 = arith.constant 32 : index
    %162 = memref.load %arg3[%c32_39] : memref<36xf32, #tpu.memory_space<smem>>
    %163 = vector.broadcast %162 : f32 to vector<2x222xf32>
    %164 = arith.mulf %163, %161 : vector<2x222xf32>
    %165 = arith.addf %160, %164 : vector<2x222xf32>
    %c0_40 = arith.constant 0 : index
    %c800 = arith.constant 800 : index
    %166 = vector.load %arg1[%c0_40, %c800] : memref<2x1024xf32, #tpu.memory_space<vmem>>, vector<2x222xf32>
    %c33_41 = arith.constant 33 : index
    %167 = memref.load %arg3[%c33_41] : memref<36xf32, #tpu.memory_space<smem>>
    %168 = vector.broadcast %167 : f32 to vector<2x222xf32>
    %169 = arith.mulf %168, %166 : vector<2x222xf32>
    %170 = arith.addf %165, %169 : vector<2x222xf32>
    %c0_42 = arith.constant 0 : index
    %c801 = arith.constant 801 : index
    %171 = vector.load %arg1[%c0_42, %c801] : memref<2x1024xf32, #tpu.memory_space<vmem>>, vector<2x222xf32>
    %c34_43 = arith.constant 34 : index
    %172 = memref.load %arg3[%c34_43] : memref<36xf32, #tpu.memory_space<smem>>
    %173 = vector.broadcast %172 : f32 to vector<2x222xf32>
    %174 = arith.mulf %173, %171 : vector<2x222xf32>
    %175 = arith.addf %170, %174 : vector<2x222xf32>
    %c0_44 = arith.constant 0 : index
    %c802 = arith.constant 802 : index
    %176 = vector.load %arg1[%c0_44, %c802] : memref<2x1024xf32, #tpu.memory_space<vmem>>, vector<2x222xf32>
    %c35 = arith.constant 35 : index
    %177 = memref.load %arg3[%c35] : memref<36xf32, #tpu.memory_space<smem>>
    %178 = vector.broadcast %177 : f32 to vector<2x222xf32>
    %179 = arith.mulf %178, %176 : vector<2x222xf32>
    %180 = arith.addf %175, %179 : vector<2x222xf32>
    %c0_45 = arith.constant 0 : index
    %181 = memref.load %arg4[%c0_45] : memref<1xf32, #tpu.memory_space<smem>>
    %182 = vector.broadcast %181 : f32 to vector<2x222xf32>
    %183 = arith.addf %180, %182 : vector<2x222xf32>
    %cst_46 = arith.constant 0.000000e+00 : f32
    %184 = vector.broadcast %cst_46 : f32 to vector<2x222xf32>
    %185 = arith.maximumf %183, %184 : vector<2x222xf32>
    %c0_47 = arith.constant 0 : index
    %c0_48 = arith.constant 0 : index
    %186 = vector.load %arg2[%c0_47, %c0_48] : memref<2x222xbf16, #tpu.memory_space<vmem>>, vector<2x222xbf16>
    %187 = arith.truncf %185 : vector<2x222xf32> to vector<2x222xbf16>
    %cst_49 = arith.constant dense<0.000000e+00> : vector<2x2xf32>
    %188 = tpu.matmul %186, %187, %cst_49 {dimension_numbers = #tpu.dot_dimension_numbers<[1], [1], [0], [0], [0, 0, 1, 0], [], []>} : vector<2x222xbf16>, vector<2x222xbf16>, vector<2x2xf32> -> vector<2x2xf32>
    %189 = tpu.iota {dimensions = array<i32: 0>} : vector<2x2xi32>
    %c0_i32 = arith.constant 0 : i32
    %190 = vector.broadcast %c0_i32 : i32 to vector<2x2xi32>
    %191 = arith.cmpi eq, %189, %190 : vector<2x2xi32>
    %c0_50 = arith.constant 0 : index
    %192 = memref.load %arg5[%c0_50] : memref<2xf32, #tpu.memory_space<smem>>
    %c1_51 = arith.constant 1 : index
    %193 = memref.load %arg5[%c1_51] : memref<2xf32, #tpu.memory_space<smem>>
    %194 = vector.broadcast %192 : f32 to vector<2x2xf32>
    %195 = vector.broadcast %193 : f32 to vector<2x2xf32>
    %196 = arith.select %191, %194, %195 : vector<2x2xi1>, vector<2x2xf32>
    %197 = arith.addf %188, %196 : vector<2x2xf32>
    %c0_52 = arith.constant 0 : index
    %c0_53 = arith.constant 0 : index
    %198 = vector.load %arg6[%c0_52, %c0_53] : memref<2x2xf32, #tpu.memory_space<vmem>>, vector<2x2xf32>
    tpu.vector_store %arg6[%c0_52, %c0_53], %197 {strides = array<i32>} : memref<2x2xf32, #tpu.memory_space<vmem>>, vector<2x2xf32>,
    return
  }
  func.func @transform_0(%arg0: i32) -> (i32, i32) {
    %c0_i32 = arith.constant 0 : i32
    %c0_i32_0 = arith.constant 0 : i32
    return %arg0, %c0_i32 : i32, i32
  }
  func.func @transform_1(%arg0: i32) -> (i32, i32) {
    %c0_i32 = arith.constant 0 : i32
    %c0_i32_0 = arith.constant 0 : i32
    %c0_i32_1 = arith.constant 0 : i32
    return %c0_i32, %c0_i32_0 : i32, i32
  }
  func.func @transform_2(%arg0: i32) -> i32 {
    %c0_i32 = arith.constant 0 : i32
    %c0_i32_0 = arith.constant 0 : i32
    return %c0_i32 : i32
  }
  func.func @transform_3(%arg0: i32) -> i32 {
    %c0_i32 = arith.constant 0 : i32
    %c0_i32_0 = arith.constant 0 : i32
    return %c0_i32 : i32
  }
  func.func @transform_4(%arg0: i32) -> i32 {
    %c0_i32 = arith.constant 0 : i32
    %c0_i32_0 = arith.constant 0 : i32
    return %c0_i32 : i32
  }
  func.func @transform_5(%arg0: i32) -> (i32, i32) {
    %c0_i32 = arith.constant 0 : i32
    %c0_i32_0 = arith.constant 0 : i32
    return %c0_i32, %arg0 : i32, i32
  }
}

</mosaic_0001>

<llo_original>
// kernel: predictor_forward.1
$region0: #{predictor_forward.1}
  #allocation0 [shape = 'u32[]', space=smem, size = 0x4, offset = 0x4, fixed_abs, tag = 'smem constant byte address 0x4 - core index']
  #allocation1 [shape = 'u32[144,128]{1,0:T(1,128)}', space=vmem, size = 0x12000, scoped, tag = 'internal scratch']
  #allocation2 [shape = 'f32[1]{0:T(128)S(6)}', space=smem, size = 0x200, scoped, tag = 'scoped memory for predictor_forward.1']
  %s0 = inlined_call_operand.vmem [shape: f32[2,1024], index: 0, kind: input, shape index: {}]
  %s1 = inlined_call_operand.vmem [shape: bf16[2,222], index: 1, kind: input, shape index: {}]
  %s2 = inlined_call_operand.vmem [shape: f32[36], index: 2, kind: input, shape index: {}]
  %s3 = inlined_call_operand.<no memory space> [shape: f32[1], index: 3, kind: input, shape index: {}]
  %s4 = inlined_call_operand.vmem [shape: f32[2], index: 4, kind: input, shape index: {}]
  %s5 = inlined_call_operand.vmem [shape: f32[2,2], index: 5, kind: output, shape index: {}]
  %s6 = sld [smem:[#allocation0]]
  $region38: #{predictor_forward.1} parent=0
    _
  %s8 = ssub.s32 1, %s6
  %s9 = scalar_select 0, %s8, %s6
  %10 = sst [smem:[#allocation2]] %s3
  $region1: #{predictor_forward.1} parent=0
    #allocation3 [shape = 'u8[512]{0}', space=smem, size = 0x200, scoped, tag = 'input window, operand 2, single buffered']
    #allocation4 [shape = 's32[1]{0}', space=sflag, size = 0x4, scoped, tag = 'scoped memory for predictor_forward.1']
    #allocation5 [shape = 'u8[512]{0}', space=smem, size = 0x200, scoped, tag = 'input window, operand 4, single buffered']
    #allocation6 [shape = 's32[1]{0}', space=sflag, size = 0x4, scoped, tag = 'scoped memory for predictor_forward.1']
    %11 = vsyncpa [#allocation4], 0
    %12 = vsyncpa [#allocation6], 0
    // Predicated region
    $region2: #{predictor_forward.1} parent=1 // pred_check
      _
    $region3: #{predictor_forward.1} parent=1 // pred_check_branch
      %14 = sbr.rel (0) target = $region5
    $region4: #{predictor_forward.1} parent=1 // pred_region
      _
    $region5: #{predictor_forward.1} parent=1 // pred_fallthru
      _
    // Predicated region
    $region6: #{predictor_forward.1} parent=1 // pred_check
      _
    $region7: #{predictor_forward.1} parent=1 // pred_check_branch
      %16 = sbr.rel (0) target = $region9
    $region8: #{predictor_forward.1} parent=1 // pred_region
      _
    $region9: #{predictor_forward.1} parent=1 // pred_fallthru
      _
    // Predicated region
    $region10: #{predictor_forward.1} parent=1 // pred_check
      _
    $region11: #{predictor_forward.1} parent=1 // pred_check_branch
      %18 = sbr.rel (0) target = $region13
    $region12: #{predictor_forward.1} parent=1 // pred_region
      %s20 = ssub.s32 16, 16
      %21 = vsyncadd [#allocation4], %s20
      %s23 = sshll.u32 %s2, 4
      %s24 = int_to_ptr.vmem [resolvable:$true] %s23
      %26 = dma.vmem_to_smem %s24, 16, [#allocation3], [#allocation4]
    $region13: #{predictor_forward.1} parent=1 // pred_fallthru
      _
    // Predicated region
    $region14: #{predictor_forward.1} parent=1 // pred_check
      _
    $region15: #{predictor_forward.1} parent=1 // pred_check_branch
      %28 = sbr.rel (0) target = $region17
    $region16: #{predictor_forward.1} parent=1 // pred_region
      _
    $region17: #{predictor_forward.1} parent=1 // pred_fallthru
      _
    // Predicated region
    $region18: #{predictor_forward.1} parent=1 // pred_check
      _
    $region19: #{predictor_forward.1} parent=1 // pred_check_branch
      %30 = sbr.rel (0) target = $region21
    $region20: #{predictor_forward.1} parent=1 // pred_region
      %s32 = ssub.s32 16, 16
      %33 = vsyncadd [#allocation6], %s32
      %s35 = sshll.u32 %s4, 4
      %s36 = int_to_ptr.vmem [resolvable:$true] %s35
      %38 = dma.vmem_to_smem %s36, 16, [#allocation5], [#allocation6]
    $region21: #{predictor_forward.1} parent=1 // pred_fallthru
      _
    // Predicated region
    $region22: #{predictor_forward.1} parent=1 // pred_check
      _
    $region23: #{predictor_forward.1} parent=1 // pred_check_branch
      %40 = sbr.rel (0) target = $region25
    $region24: #{predictor_forward.1} parent=1 // pred_region
      %41 = dma.done [#allocation4], 16
    $region25: #{predictor_forward.1} parent=1 // pred_fallthru
      _
    // Predicated region
    $region26: #{predictor_forward.1} parent=1 // pred_check
      _
    $region27: #{predictor_forward.1} parent=1 // pred_check_branch
      %43 = sbr.rel (0) target = $region29
    $region28: #{predictor_forward.1} parent=1 // pred_region
      %44 = dma.done [#allocation6], 16
    $region29: #{predictor_forward.1} parent=1 // pred_fallthru
      _
    %45 = sfence
    %v47 = vld [vmem:[%s0] sm:$0xf]
    %s48 = sld [smem:[#allocation3]]
    %v49 = vstv %s48
    %v50 = vmul.f32 %v49, %v47
    %v51 = vadd.f32 %v50, 0.0
    %s52 = sld [smem:[#allocation3 + $0x1]]
    %v53 = vstv %s52
    %v54 = vmul.f32 %v53, %v47
    %56 = vrot.lane.b32.xlu0 %v54, 127
    %v57 = vpop.permute.xlu0 %56
    %v58 = vrot.slane %v57, 2
    %vm59 = vcmask 1039360
    %v60 = vsel %vm59, %v57, %v58
    %v62 = vadd.f32 %v51, %v60
    %s63 = sld [smem:[#allocation3 + $0x2]]
    %v64 = vstv %s63
    %v65 = vmul.f32 %v64, %v47
    %67 = vrot.lane.b32.xlu0 %v65, 126
    %v68 = vpop.permute.xlu0 %67
    %v69 = vrot.slane %v68, 2
    %vm70 = vcmask 1031168
    %v71 = vsel %vm70, %v68, %v69
    %v73 = vadd.f32 %v62, %v71
    %s74 = sld [smem:[#allocation3 + $0x3]]
    %v75 = vstv %s74
    %v76 = vmul.f32 %v75, %v47
    %78 = vrot.lane.b32.xlu0 %v76, 112
    %v79 = vpop.permute.xlu0 %78
    %v80 = vrot.slane %v79, 2
    %vm81 = vcmask 916480
    %v82 = vsel %vm81, %v79, %v80
    %v84 = vadd.f32 %v73, %v82
    %s85 = sld [smem:[#allocation3 + $0x4]]
    %v86 = vstv %s85
    %v87 = vmul.f32 %v86, %v47
    %89 = vrot.lane.b32.xlu0 %v87, 111
    %v90 = vpop.permute.xlu0 %89
    %v91 = vrot.slane %v90, 2
    %vm92 = vcmask 908288
    %v93 = vsel %vm92, %v90, %v91
    %v95 = vadd.f32 %v84, %v93
    %s96 = sld [smem:[#allocation3 + $0x5]]
    %v97 = vstv %s96
    %v98 = vmul.f32 %v97, %v47
    %100 = vrot.lane.b32.xlu0 %v98, 110
    %v101 = vpop.permute.xlu0 %100
    %v102 = vrot.slane %v101, 2
    %vm103 = vcmask 900096
    %v104 = vsel %vm103, %v101, %v102
    %v106 = vadd.f32 %v95, %v104
    %s107 = sld [smem:[#allocation3 + $0x6]]
    %v108 = vstv %s107
    %v109 = vmul.f32 %v108, %v47
    %111 = vrot.lane.b32.xlu0 %v109, 96
    %v112 = vpop.permute.xlu0 %111
    %v113 = vrot.slane %v112, 2
    %vm114 = vcmask 785408
    %v115 = vsel %vm114, %v112, %v113
    %v117 = vadd.f32 %v106, %v115
    %s118 = sld [smem:[#allocation3 + $0x7]]
    %v119 = vstv %s118
    %v120 = vmul.f32 %v119, %v47
    %122 = vrot.lane.b32.xlu0 %v120, 95
    %v123 = vpop.permute.xlu0 %122
    %v124 = vrot.slane %v123, 2
    %vm125 = vcmask 777216
    %v126 = vsel %vm125, %v123, %v124
    %v128 = vadd.f32 %v117, %v126
    %s129 = sld [smem:[#allocation3 + $0x8]]
    %v130 = vstv %s129
    %v131 = vmul.f32 %v130, %v47
    %133 = vrot.lane.b32.xlu0 %v131, 94
    %v134 = vpop.permute.xlu0 %133
    %v135 = vrot.slane %v134, 2
    %vm136 = vcmask 769024
    %v137 = vsel %vm136, %v134, %v135
    %v139 = vadd.f32 %v128, %v137
    %v140 = vld [vmem:[%s0 + $0x4] sm:$0xf]
    %s141 = sld [smem:[#allocation3 + $0x9]]
    %v142 = vstv %s141
    %v143 = vmul.f32 %v142, %v140
    %v144 = vadd.f32 %v139, %v143
    %s145 = sld [smem:[#allocation3 + $0xa]]
    %v146 = vstv %s145
    %v147 = vmul.f32 %v146, %v140
    %149 = vrot.lane.b32.xlu0 %v147, 127
    %v150 = vpop.permute.xlu0 %149
    %v151 = vrot.slane %v150, 2
    %v152 = vsel %vm59, %v150, %v151
    %v154 = vadd.f32 %v144, %v152
    %s155 = sld [smem:[#allocation3 + $0xb]]
    %v156 = vstv %s155
    %v157 = vmul.f32 %v156, %v140
    %159 = vrot.lane.b32.xlu0 %v157, 126
    %v160 = vpop.permute.xlu0 %159
    %v161 = vrot.slane %v160, 2
    %v162 = vsel %vm70, %v160, %v161
    %v164 = vadd.f32 %v154, %v162
    %s165 = sld [smem:[#allocation3 + $0xc]]
    %v166 = vstv %s165
    %v167 = vmul.f32 %v166, %v140
    %169 = vrot.lane.b32.xlu0 %v167, 112
    %v170 = vpop.permute.xlu0 %169
    %v171 = vrot.slane %v170, 2
    %v172 = vsel %vm81, %v170, %v171
    %v174 = vadd.f32 %v164, %v172
    %s175 = sld [smem:[#allocation3 + $0xd]]
    %v176 = vstv %s175
    %v177 = vmul.f32 %v176, %v140
    %179 = vrot.lane.b32.xlu0 %v177, 111
    %v180 = vpop.permute.xlu0 %179
    %v181 = vrot.slane %v180, 2
    %v182 = vsel %vm92, %v180, %v181
    %v184 = vadd.f32 %v174, %v182
    %s185 = sld [smem:[#allocation3 + $0xe]]
    %v186 = vstv %s185
    %v187 = vmul.f32 %v186, %v140
    %189 = vrot.lane.b32.xlu0 %v187, 110
    %v190 = vpop.permute.xlu0 %189
    %v191 = vrot.slane %v190, 2
    %v192 = vsel %vm103, %v190, %v191
    %v194 = vadd.f32 %v184, %v192
    %s195 = sld [smem:[#allocation3 + $0xf]]
    %v196 = vstv %s195
    %v197 = vmul.f32 %v196, %v140
    %199 = vrot.lane.b32.xlu0 %v197, 96
    %v200 = vpop.permute.xlu0 %199
    %v201 = vrot.slane %v200, 2
    %v202 = vsel %vm114, %v200, %v201
    %v204 = vadd.f32 %v194, %v202
    %s205 = sld [smem:[#allocation3 + $0x10]]
    %v206 = vstv %s205
    %v207 = vmul.f32 %v206, %v140
    %209 = vrot.lane.b32.xlu0 %v207, 95
    %v210 = vpop.permute.xlu0 %209
    %v211 = vrot.slane %v210, 2
    %v212 = vsel %vm125, %v210, %v211
    %v214 = vadd.f32 %v204, %v212
    %s215 = sld [smem:[#allocation3 + $0x11]]
    %v216 = vstv %s215
    %v217 = vmul.f32 %v216, %v140
    %219 = vrot.lane.b32.xlu0 %v217, 94
    %v220 = vpop.permute.xlu0 %219
    %v221 = vrot.slane %v220, 2
    %v222 = vsel %vm136, %v220, %v221
    %v224 = vadd.f32 %v214, %v222
    %v225 = vld [vmem:[%s0 + $0x8] sm:$0xf]
    %s226 = sld [smem:[#allocation3 + $0x12]]
    %v227 = vstv %s226
    %v228 = vmul.f32 %v227, %v225
    %v229 = vadd.f32 %v224, %v228
    %s230 = sld [smem:[#allocation3 + $0x13]]
    %v231 = vstv %s230
    %v232 = vmul.f32 %v231, %v225
    %234 = vrot.lane.b32.xlu0 %v232, 127
    %v235 = vpop.permute.xlu0 %234
    %v236 = vrot.slane %v235, 2
    %v237 = vsel %vm59, %v235, %v236
    %v239 = vadd.f32 %v229, %v237
    %s240 = sld [smem:[#allocation3 + $0x14]]
    %v241 = vstv %s240
    %v242 = vmul.f32 %v241, %v225
    %244 = vrot.lane.b32.xlu0 %v242, 126
    %v245 = vpop.permute.xlu0 %244
    %v246 = vrot.slane %v245, 2
    %v247 = vsel %vm70, %v245, %v246
    %v249 = vadd.f32 %v239, %v247
    %s250 = sld [smem:[#allocation3 + $0x15]]
    %v251 = vstv %s250
    %v252 = vmul.f32 %v251, %v225
    %254 = vrot.lane.b32.xlu0 %v252, 112
    %v255 = vpop.permute.xlu0 %254
    %v256 = vrot.slane %v255, 2
    %v257 = vsel %vm81, %v255, %v256
    %v259 = vadd.f32 %v249, %v257
    %s260 = sld [smem:[#allocation3 + $0x16]]
    %v261 = vstv %s260
    %v262 = vmul.f32 %v261, %v225
    %264 = vrot.lane.b32.xlu0 %v262, 111
    %v265 = vpop.permute.xlu0 %264
    %v266 = vrot.slane %v265, 2
    %v267 = vsel %vm92, %v265, %v266
    %v269 = vadd.f32 %v259, %v267
    %s270 = sld [smem:[#allocation3 + $0x17]]
    %v271 = vstv %s270
    %v272 = vmul.f32 %v271, %v225
    %274 = vrot.lane.b32.xlu0 %v272, 110
    %v275 = vpop.permute.xlu0 %274
    %v276 = vrot.slane %v275, 2
    %v277 = vsel %vm103, %v275, %v276
    %v279 = vadd.f32 %v269, %v277
    %s280 = sld [smem:[#allocation3 + $0x18]]
    %v281 = vstv %s280
    %v282 = vmul.f32 %v281, %v225
    %284 = vrot.lane.b32.xlu0 %v282, 96
    %v285 = vpop.permute.xlu0 %284
    %v286 = vrot.slane %v285, 2
    %v287 = vsel %vm114, %v285, %v286
    %v289 = vadd.f32 %v279, %v287
    %s290 = sld [smem:[#allocation3 + $0x19]]
    %v291 = vstv %s290
    %v292 = vmul.f32 %v291, %v225
    %294 = vrot.lane.b32.xlu0 %v292, 95
    %v295 = vpop.permute.xlu0 %294
    %v296 = vrot.slane %v295, 2
    %v297 = vsel %vm125, %v295, %v296
    %v299 = vadd.f32 %v289, %v297
    %s300 = sld [smem:[#allocation3 + $0x1a]]
    %v301 = vstv %s300
    %v302 = vmul.f32 %v301, %v225
    %304 = vrot.lane.b32.xlu0 %v302, 94
    %v305 = vpop.permute.xlu0 %304
    %v306 = vrot.slane %v305, 2
    %v307 = vsel %vm136, %v305, %v306
    %v309 = vadd.f32 %v299, %v307
    %v310 = vld [vmem:[%s0 + $0xc] sm:$0xf]
    %s311 = sld [smem:[#allocation3 + $0x1b]]
    %v312 = vstv %s311
    %v313 = vmul.f32 %v312, %v310
    %v314 = vadd.f32 %v309, %v313
    %s315 = sld [smem:[#allocation3 + $0x1c]]
    %v316 = vstv %s315
    %v317 = vmul.f32 %v316, %v310
    %319 = vrot.lane.b32.xlu0 %v317, 127
    %v320 = vpop.permute.xlu0 %319
    %v321 = vrot.slane %v320, 2
    %v322 = vsel %vm59, %v320, %v321
    %v324 = vadd.f32 %v314, %v322
    %s325 = sld [smem:[#allocation3 + $0x1d]]
    %v326 = vstv %s325
    %v327 = vmul.f32 %v326, %v310
    %329 = vrot.lane.b32.xlu0 %v327, 126
    %v330 = vpop.permute.xlu0 %329
    %v331 = vrot.slane %v330, 2
    %v332 = vsel %vm70, %v330, %v331
    %v334 = vadd.f32 %v324, %v332
    %s335 = sld [smem:[#allocation3 + $0x1e]]
    %v336 = vstv %s335
    %v337 = vmul.f32 %v336, %v310
    %339 = vrot.lane.b32.xlu0 %v337, 112
    %v340 = vpop.permute.xlu0 %339
    %v341 = vrot.slane %v340, 2
    %v342 = vsel %vm81, %v340, %v341
    %v344 = vadd.f32 %v334, %v342
    %s345 = sld [smem:[#allocation3 + $0x1f]]
    %v346 = vstv %s345
    %v347 = vmul.f32 %v346, %v310
    %349 = vrot.lane.b32.xlu0 %v347, 111
    %v350 = vpop.permute.xlu0 %349
    %v351 = vrot.slane %v350, 2
    %v352 = vsel %vm92, %v350, %v351
    %v354 = vadd.f32 %v344, %v352
    %s355 = sld [smem:[#allocation3 + $0x20]]
    %v356 = vstv %s355
    %v357 = vmul.f32 %v356, %v310
    %359 = vrot.lane.b32.xlu0 %v357, 110
    %v360 = vpop.permute.xlu0 %359
    %v361 = vrot.slane %v360, 2
    %v362 = vsel %vm103, %v360, %v361
    %v364 = vadd.f32 %v354, %v362
    %s365 = sld [smem:[#allocation3 + $0x21]]
    %v366 = vstv %s365
    %v367 = vmul.f32 %v366, %v310
    %369 = vrot.lane.b32.xlu0 %v367, 96
    %v370 = vpop.permute.xlu0 %369
    %v371 = vrot.slane %v370, 2
    %v372 = vsel %vm114, %v370, %v371
    %v374 = vadd.f32 %v364, %v372
    %s375 = sld [smem:[#allocation3 + $0x22]]
    %v376 = vstv %s375
    %v377 = vmul.f32 %v376, %v310
    %379 = vrot.lane.b32.xlu0 %v377, 95
    %v380 = vpop.permute.xlu0 %379
    %v381 = vrot.slane %v380, 2
    %v382 = vsel %vm125, %v380, %v381
    %v384 = vadd.f32 %v374, %v382
    %s385 = sld [smem:[#allocation3 + $0x23]]
    %v386 = vstv %s385
    %v387 = vmul.f32 %v386, %v310
    %389 = vrot.lane.b32.xlu0 %v387, 94
    %v390 = vpop.permute.xlu0 %389
    %v391 = vrot.slane %v390, 2
    %v392 = vsel %vm136, %v390, %v391
    %v394 = vadd.f32 %v384, %v392
    %s395 = sld [smem:[#allocation2]]
    %v396 = vstv %s395
    %v397 = vadd.f32 %v394, %v396
    %v398 = vmax.f32 %v397, 0.0
    %v399 = vld [vmem:[%s1] sm:$0x3]
    %v402 = vunpack.c.l.s4 1983009808
    %v403 = vunpack.c.0.s8 %v402
    %v404 = vlaneseq
    %v405 = vshrl.u32 %v404, 7
    %v406 = vsub.s32 %v403, %v405
    %v407 = vrot.slane %v398, %v406
    %v408 = vcombine.high %v407, %v407
    %v411 = vpack.c.bf16 %v407, %v407
    %v412 = vpack.c.bf16 %v408, %v408
    %v413 = vlaneseq
    %v414 = vshrl.u32 %v413, 7
    %vm415 = vcmp.eq.s32.totalorder %v414, 0
    %s416 = sld [smem:[#allocation5]]
    %s417 = sld [smem:[#allocation5 + $0x1]]
    %v418 = vstv %s416
    %v419 = vstv %s417
    %v420 = vsel %vm415, %v418, %v419
    %v423 = vunpack.c.l.s4 1966171168
    %v424 = vunpack.c.0.s8 %v423
    %v425 = vlaneseq
    %v426 = vshrl.u32 %v425, 7
    %v427 = vsub.s32 %v424, %v426
    %v428 = vrot.slane %v399, %v427
    %v429 = vcombine.high %v428, %v428
    %v431 = vunpack.c.l.s4 1966171168
    %v432 = vunpack.c.0.s8 %v431
    %v433 = vlaneseq
    %v434 = vshrl.u32 %v433, 7
    %v435 = vsub.s32 %v432, %v434
    %v436 = vrot.slane %v428, %v435
    %v438 = vunpack.c.l.s4 1966171168
    %v439 = vunpack.c.0.s8 %v438
    %v440 = vlaneseq
    %v441 = vshrl.u32 %v440, 7
    %v442 = vsub.s32 %v439, %v441
    %v443 = vrot.slane %v429, %v442
    %v446 = vsel %vm136, %v443, 0
    %v449 = vsel %vm136, %v412, 0
    %451 = vmatprep.subr.bf16.mxu0 %v449
    %452 = vmatpush1.bf16.xpose.msra.mxu0 %v411
    %453 = vmatprep.subr.bf16.mxu0 0
    %454 = vmatpush1.bf16.xpose.msra.mxu0 0
    %455 = vmatprep.subr.bf16.mxu0 0
    %456 = vmatpush1.bf16.xpose.msra.mxu0 0
    %457 = vmatprep.subr.bf16.mxu0 0
    %458 = vmatpush1.bf16.xpose.msra.mxu0 0
    %459 = vmatprep.subr.bf16.mxu0 0
    %460 = vmatpush1.bf16.xpose.msra.mxu0 0
    %461 = vmatprep.subr.bf16.mxu0 0
    %462 = vmatpush1.bf16.xpose.msra.mxu0 0
    %463 = vmatprep.subr.bf16.mxu0 0
    %464 = vmatpush1.bf16.xpose.msra.mxu0 0
    %465 = vmatprep.subr.bf16.mxu0 0
    %466 = vmatpush1.bf16.xpose.msra.mxu0 0
    %467 = vmatprep.subr.bf16.mxu0 0
    %468 = vmatpush1.bf16.xpose.msra.mxu0 0
    %469 = vmatprep.subr.bf16.mxu0 0
    %470 = vmatpush1.bf16.xpose.msra.mxu0 0
    %471 = vmatprep.subr.bf16.mxu0 0
    %472 = vmatpush1.bf16.xpose.msra.mxu0 0
    %473 = vmatprep.subr.bf16.mxu0 0
    %474 = vmatpush1.bf16.xpose.msra.mxu0 0
    %475 = vmatprep.subr.bf16.mxu0 0
    %476 = vmatpush1.bf16.xpose.msra.mxu0 0
    %477 = vmatprep.subr.bf16.mxu0 0
    %478 = vmatpush1.bf16.xpose.msra.mxu0 0
    %479 = vmatprep.subr.bf16.mxu0 0
    %480 = vmatpush1.bf16.xpose.msra.mxu0 0
    %481 = vmatprep.subr.bf16.mxu0 0
    %482 = vmatpush1.bf16.xpose.msra.mxu0 0
    %483 = vmatprep.mubr.bf16.mxu0 %v446
    %484 = vmatmul.mubr.bf16.gmra.mrb[0].mxu0 %v436
    %v485 = vpop.f32.mrb[0].mxu0
    %v486 = vadd.f32 %v420, %v485
    %v487 = vpop.f32.mrb[0].mxu0
    %v488 = vpop.f32.mrb[0].mxu0
    %v489 = vpop.f32.mrb[0].mxu0
    %490 = vdwg.mxu0
    %vm491 = vcmask 9216
    %492 = vst.msk [vmem:[%s5] sm:$0x3] %vm491, %v486
    // Predicated region
    $region30: #{predictor_forward.1} parent=1 // pred_check
      _
    $region31: #{predictor_forward.1} parent=1 // pred_check_branch
      %494 = sbr.rel (0) target = $region33
    $region32: #{predictor_forward.1} parent=1 // pred_region
      _
    $region33: #{predictor_forward.1} parent=1 // pred_fallthru
      _
    // Predicated region
    $region34: #{predictor_forward.1} parent=1 // pred_check
      _
    $region35: #{predictor_forward.1} parent=1 // pred_check_branch
      %496 = sbr.rel (0) target = $region37
    $region36: #{predictor_forward.1} parent=1 // pred_region
      _
    $region37: #{predictor_forward.1} parent=1 // pred_fallthru
      _
    %497 = vsyncpa [#allocation4], 1
    %498 = vsyncpa [#allocation6], 1

</llo_original>
